<compile_context>
chip_gen: v5e
topology: v5e:2x2
jax: 0.10.0
libtpu: 0.0.40
codegen_flags: <defaults>
</compile_context>

<pallas_src>
import functools

import jax
import jax.numpy as jnp
import numpy as np
from jax.experimental import pallas as pl
from jax.experimental.pallas import tpu as pltpu


def _gm_kernel(pred_ref, targ_ref, wrow_ref, wcol_ref, out_ref, halo_ref, *,
               scales, tile_h, max_step, n_tiles):
    """One (batch, H-tile) block.

    pred_ref/targ_ref: (1, TH, W) VMEM blocks.
    wrow_ref: (TH, 2*n_scales) per-tile row weights
              (col 2s: grad_x on-grid rows; col 2s+1: grad_y rows * 1/numel).
    wcol_ref: (2*n_scales, W) col weights
              (row 2s: grad_x cols * 1/numel; row 2s+1: grad_y on-grid cols).
    out_ref:  (1, 1, W) f32 partial sums, accumulated across H-tiles.
    halo_ref: (max_step, W) f32 scratch carrying the previous tile's last
              diff rows (cross-tile grad_y terms).
    `scales`: static tuple of
              (step, inv_numel, do_gx, gx_rows_all_ones, do_gy, gy_cols_all_ones).
    """
    t = pl.program_id(1)

    @pl.when(t == 0)
    def _():
        out_ref[...] = jnp.zeros_like(out_ref)

    # TODO(synk): keep d in bf16 on v6e/v7x when inputs are bf16.
    d = (pred_ref[0] - targ_ref[0]).astype(jnp.float32)        # (TH, W)
    width = d.shape[1]

    acc = jnp.zeros((1, width), jnp.float32)
    for s, (step, _inv, do_gx, gx_rows_ones, do_gy, gy_cols_ones) in enumerate(scales):
        if do_gx:
            # |d[i, j] - d[i, j-step]| via an XLU roll; wrapped cols are zero-weighted.
            gx = jnp.abs(d - pltpu.roll(d, step, axis=1))
            sx = jnp.sum(gx if gx_rows_ones else gx * wrow_ref[:, 2 * s:2 * s + 1],
                         axis=0, keepdims=True)
            acc = acc + sx * wcol_ref[2 * s:2 * s + 1, :]
        if do_gy:
            # |d[i, j] - d[i-step, j]|; wrapped / first-local / padded rows zero-weighted.
            gy = jnp.abs(d - pltpu.roll(d, step, axis=0))
            sy = jnp.sum(gy * wrow_ref[:, 2 * s + 1:2 * s + 2],
                         axis=0, keepdims=True)
            acc = acc + (sy if gy_cols_ones else sy * wcol_ref[2 * s + 1:2 * s + 2, :])

    if n_tiles > 1:
        # Cross-tile grad_y: row 0 of this tile vs. rows carried from the
        # previous tile of the SAME image (t iterates fastest; t == 0 never reads).
        @pl.when(t > 0)
        def _():
            d0 = d[0:1, :]
            hacc = jnp.zeros((1, width), jnp.float32)
            for s, (step, inv_numel, _dgx, _gxo, _dgy, gy_cols_ones) in enumerate(scales):
                dprev = halo_ref[max_step - step:max_step - step + 1, :]
                g = jnp.abs(d0 - dprev) * inv_numel
                if not gy_cols_ones:
                    g = g * wcol_ref[2 * s + 1:2 * s + 2, :]
                hacc = hacc + g
            out_ref[0] += hacc

        # Save this tile's last diff rows for the next tile (after the read above).
        halo_ref[...] = d[tile_h - max_step:, :]

    out_ref[0] += acc


def gm_loss(prediction, target, n_scales, *, tile_h=256):
    """Full GMLoss forward: sum over scales of per-scale gradient losses."""
    assert prediction.shape == target.shape and prediction.ndim == 3
    assert n_scales >= 1
    b, h, w = prediction.shape
    max_step = 2 ** (n_scales - 1)

    # H tiling: one tile for small images; fixed tiles (+ zero padding for
    # ragged H) otherwise. TH must be a multiple of 8 (layout) and of max_step
    # (so coarse grids align with tile boundaries and the halo is one row/scale).
    if h <= tile_h:
        th, n_tiles, h_pad = h, 1, h
    else:
        th = tile_h
        assert th % 8 == 0 and th % max_step == 0, (
            "tile_h must be a multiple of 8 and of 2**(n_scales-1)")
        n_tiles = -(-h // th)
        h_pad = n_tiles * th

    pred, targ = prediction, target
    if h_pad != h:
        pad = ((0, 0), (0, h_pad - h), (0, 0))
        pred = jnp.pad(pred, pad)
        targ = jnp.pad(targ, pad)

    # Precomputed separable weights (1/numel folded in) replace in-kernel masks.
    i = np.arange(h_pad)
    j = np.arange(w)
    w_row = np.zeros((h_pad, 2 * n_scales), np.float32)
    w_col = np.zeros((2 * n_scales, w), np.float32)
    scales = []
    for s in range(n_scales):
        step = 2 ** s
        hs = -(-h // step)                       # len(range(0, h, step))
        ws = -(-w // step)
        inv_numel = 1.0 / float(b * hs * ws)
        on_i = (i % step == 0)
        on_j = (j % step == 0)
        # grad_x: on-grid rows (padded rows give gx == 0 anyway);
        #         on-grid cols except the first coarse col, * 1/numel.
        w_row[:, 2 * s] = on_i
        w_col[2 * s] = (on_j & (j >= step)) * inv_numel
        # grad_y: on-grid rows, excluding each tile's first `step` local rows
        #         (covered by the halo carry) and zero-padded rows, * 1/numel;
        #         on-grid cols.
        w_row[:, 2 * s + 1] = (on_i & ((i % th) >= step) & (i < h)) * inv_numel
        w_col[2 * s + 1] = on_j
        scales.append((
            step, inv_numel,
            bool(np.any(w_col[2 * s])),                 # do_gx (False if step >= w)
            bool(np.all(w_row[:, 2 * s] == 1.0)),       # gx rows all ones (step == 1)
            bool(np.any(w_row[:, 2 * s + 1])),          # do_gy (in-tile part)
            bool(np.all(w_col[2 * s + 1] == 1.0)),      # gy cols all ones (step == 1)
        ))

    kernel = functools.partial(_gm_kernel, scales=tuple(scales), tile_h=th,
                               max_step=max_step, n_tiles=n_tiles)

    itemsize = jnp.dtype(prediction.dtype).itemsize
    cost = pl.CostEstimate(
        flops=int(9 * b * h_pad * w * n_scales),
        transcendentals=0,
        bytes_accessed=int(2 * b * h_pad * w * itemsize + b * w * 4),
    )
    try:
        # Larger scoped VMEM on v5e/v6e (128 MiB physical); stays <= ~45 MiB on v7x.
        vmem_limit = min(96 * 1024 * 1024,
                         int(0.7 * pltpu.get_tpu_info().vmem_capacity_bytes))
    except Exception:  # pragma: no cover - conservative fallback
        vmem_limit = 32 * 1024 * 1024

    n2 = 2 * n_scales
    partials = pl.pallas_call(
        kernel,
        out_shape=jax.ShapeDtypeStruct((b, 1, w), jnp.float32),
        grid_spec=pltpu.PrefetchScalarGridSpec(
            num_scalar_prefetch=0,
            grid=(b, n_tiles),
            in_specs=[
                pl.BlockSpec((1, th, w), lambda bi, ti: (bi, ti, 0)),
                pl.BlockSpec((1, th, w), lambda bi, ti: (bi, ti, 0)),
                pl.BlockSpec((th, n2), lambda bi, ti: (ti, 0)),
                pl.BlockSpec((n2, w), lambda bi, ti: (0, 0)),   # shared across grid
            ],
            out_specs=pl.BlockSpec((1, 1, w), lambda bi, ti: (bi, 0, 0)),
            scratch_shapes=[pltpu.VMEM((max_step, w), jnp.float32)],
        ),
        compiler_params=pltpu.CompilerParams(
            dimension_semantics=("parallel", "arbitrary"),
            vmem_limit_bytes=vmem_limit,
        ),
        cost_estimate=cost,
    )(pred, targ, jnp.asarray(w_row), jnp.asarray(w_col))

    # Final tiny cross-lane / cross-batch reduction in JAX.
    return jnp.sum(partials)


def _gm_loss_ref(prediction, target, n_scales):
    """Pure-JAX reference mirroring the PyTorch slicing formulation."""
    def one_scale(p, t):
        diff = p - t
        gx = jnp.abs(diff[:, :, 1:] - diff[:, :, :-1])
        gy = jnp.abs(diff[:, 1:, :] - diff[:, :-1, :])
        return (jnp.sum(gx) + jnp.sum(gy)) / jnp.float32(t.size)

    total = one_scale(prediction, target)
    for s in range(1, n_scales):
        step = 2 ** s
        total = total + one_scale(prediction[:, ::step, ::step],
                                  target[:, ::step, ::step])
    return total


if __name__ == "__main__":
    n_scales = 3
    # (B, H, W, tile_h): single-tile path, multi-tile + halo path, ragged-H path.
    configs = [
        (2, 16, 128, 256),
        (2, 32, 128, 8),
        (2, 28, 128, 8),
    ]
    key = jax.random.PRNGKey(0)
    for (bb, hh, ww, th) in configs:
        key, kp, kt = jax.random.split(key, 3)
        prediction = jax.random.normal(kp, (bb, hh, ww), dtype=jnp.float32)
        target = jax.random.normal(kt, (bb, hh, ww), dtype=jnp.float32)

        loss = jax.block_until_ready(gm_loss(prediction, target, n_scales, tile_h=th))
        ref = jax.block_until_ready(_gm_loss_ref(prediction, target, n_scales))
        assert jnp.allclose(loss, ref, rtol=1e-4, atol=1e-5), (bb, hh, ww, loss, ref)
    print("KERNEL_OK")
</pallas_src>

<mosaic_0001>
module attributes {stable_mosaic.version = 11 : i64} {
  func.func @_gm_kernel(%arg0: i32, %arg1: i32, %arg2: memref<1x16x128xf32, #tpu.memory_space<vmem>>, %arg3: memref<1x16x128xf32, #tpu.memory_space<vmem>>, %arg4: memref<16x6xf32, #tpu.memory_space<vmem>>, %arg5: memref<6x128xf32, #tpu.memory_space<vmem>>, %arg6: memref<1x1x128xf32, #tpu.memory_space<vmem>>, %arg7: memref<4x128xf32, #tpu.memory_space<vmem>>) attributes {dimension_semantics = [#tpu.dimension_semantics<parallel>, #tpu.dimension_semantics<arbitrary>], iteration_bounds = array<i64: 2, 1>, scalar_prefetch = 0 : i64, scratch_operands = 1 : i64, tpu.core_type = #tpu.core_type<tc>, window_params = [{transform_indices = @transform_0, window_bounds = array<i64: 1, 16, 128>}, {transform_indices = @transform_1, window_bounds = array<i64: 1, 16, 128>}, {transform_indices = @transform_2, window_bounds = array<i64: 16, 6>}, {pipeline_mode = #tpu.pipeline_mode<synchronous>, transform_indices = @transform_3, window_bounds = array<i64: 6, 128>}, {transform_indices = @transform_4, window_bounds = array<i64: 1, 1, 128>}]} {
    %c0_i32 = arith.constant 0 : i32
    %0 = arith.cmpi eq, %arg1, %c0_i32 : i32
    %1 = arith.extui %0 : i1 to i32
    %c0_i32_0 = arith.constant 0 : i32
    %2 = arith.cmpi ne, %1, %c0_i32_0 : i32
    scf.if %2 {
      %cst_36 = arith.constant 0.000000e+00 : f32
      %76 = vector.broadcast %cst_36 : f32 to vector<1x1x128xf32>
      %c0_37 = arith.constant 0 : index
      %c0_38 = arith.constant 0 : index
      %c0_39 = arith.constant 0 : index
      %77 = vector.load %arg6[%c0_37, %c0_38, %c0_39] : memref<1x1x128xf32, #tpu.memory_space<vmem>>, vector<1x1x128xf32>
      tpu.vector_store %arg6[%c0_37, %c0_38, %c0_39], %76 {strides = array<i32>} : memref<1x1x128xf32, #tpu.memory_space<vmem>>, vector<1x1x128xf32>,
    } else {
    }
    %c0 = arith.constant 0 : index
    %c0_1 = arith.constant 0 : index
    %c0_2 = arith.constant 0 : index
    %3 = vector.load %arg2[%c0, %c0_1, %c0_2] : memref<1x16x128xf32, #tpu.memory_space<vmem>>, vector<1x16x128xf32>
    %4 = vector.shape_cast %3 : vector<1x16x128xf32> to vector<16x128xf32>
    %c0_3 = arith.constant 0 : index
    %c0_4 = arith.constant 0 : index
    %c0_5 = arith.constant 0 : index
    %5 = vector.load %arg3[%c0_3, %c0_4, %c0_5] : memref<1x16x128xf32, #tpu.memory_space<vmem>>, vector<1x16x128xf32>
    %6 = vector.shape_cast %5 : vector<1x16x128xf32> to vector<16x128xf32>
    %7 = arith.subf %4, %6 : vector<16x128xf32>
    %cst = arith.constant 0.000000e+00 : f32
    %8 = vector.broadcast %cst : f32 to vector<1x128xf32>
    %c1_i32 = arith.constant 1 : i32
    %9 = tpu.dynamic_rotate %7 by %c1_i32 dim 1 : vector<16x128xf32>, i32 -> vector<16x128xf32>
    %10 = arith.subf %7, %9 : vector<16x128xf32>
    %11 = math.absf %10 : vector<16x128xf32>
    %cst_6 = arith.constant dense<0.000000e+00> : vector<128xf32>
    %12 = vector.multi_reduction <add>, %11, %cst_6 [0] : vector<16x128xf32> to vector<128xf32>
    %13 = vector.shape_cast %12 : vector<128xf32> to vector<1x128xf32>
    %c0_7 = arith.constant 0 : index
    %c0_8 = arith.constant 0 : index
    %14 = vector.load %arg5[%c0_7, %c0_8] : memref<6x128xf32, #tpu.memory_space<vmem>>, vector<1x128xf32>
    %15 = arith.mulf %13, %14 : vector<1x128xf32>
    %16 = arith.addf %8, %15 : vector<1x128xf32>
    %c1_i32_9 = arith.constant 1 : i32
    %17 = tpu.dynamic_rotate %7 by %c1_i32_9 dim 0 : vector<16x128xf32>, i32 -> vector<16x128xf32>
    %18 = arith.subf %7, %17 : vector<16x128xf32>
    %19 = math.absf %18 : vector<16x128xf32>
    %c0_10 = arith.constant 0 : index
    %c1 = arith.constant 1 : index
    %20 = vector.load %arg4[%c0_10, %c1] : memref<16x6xf32, #tpu.memory_space<vmem>>, vector<16x1xf32>
    %21 = vector.broadcast %20 : vector<16x1xf32> to vector<16x128xf32>
    %22 = arith.mulf %19, %21 : vector<16x128xf32>
    %cst_11 = arith.constant dense<0.000000e+00> : vector<128xf32>
    %23 = vector.multi_reduction <add>, %22, %cst_11 [0] : vector<16x128xf32> to vector<128xf32>
    %24 = vector.shape_cast %23 : vector<128xf32> to vector<1x128xf32>
    %25 = arith.addf %16, %24 : vector<1x128xf32>
    %c2_i32 = arith.constant 2 : i32
    %26 = tpu.dynamic_rotate %7 by %c2_i32 dim 1 : vector<16x128xf32>, i32 -> vector<16x128xf32>
    %27 = arith.subf %7, %26 : vector<16x128xf32>
    %28 = math.absf %27 : vector<16x128xf32>
    %c0_12 = arith.constant 0 : index
    %c2 = arith.constant 2 : index
    %29 = vector.load %arg4[%c0_12, %c2] : memref<16x6xf32, #tpu.memory_space<vmem>>, vector<16x1xf32>
    %30 = vector.broadcast %29 : vector<16x1xf32> to vector<16x128xf32>
    %31 = arith.mulf %28, %30 : vector<16x128xf32>
    %cst_13 = arith.constant dense<0.000000e+00> : vector<128xf32>
    %32 = vector.multi_reduction <add>, %31, %cst_13 [0] : vector<16x128xf32> to vector<128xf32>
    %33 = vector.shape_cast %32 : vector<128xf32> to vector<1x128xf32>
    %c2_14 = arith.constant 2 : index
    %c0_15 = arith.constant 0 : index
    %34 = vector.load %arg5[%c2_14, %c0_15] : memref<6x128xf32, #tpu.memory_space<vmem>>, vector<1x128xf32>
    %35 = arith.mulf %33, %34 : vector<1x128xf32>
    %36 = arith.addf %25, %35 : vector<1x128xf32>
    %c2_i32_16 = arith.constant 2 : i32
    %37 = tpu.dynamic_rotate %7 by %c2_i32_16 dim 0 : vector<16x128xf32>, i32 -> vector<16x128xf32>
    %38 = arith.subf %7, %37 : vector<16x128xf32>
    %39 = math.absf %38 : vector<16x128xf32>
    %c0_17 = arith.constant 0 : index
    %c3 = arith.constant 3 : index
    %40 = vector.load %arg4[%c0_17, %c3] : memref<16x6xf32, #tpu.memory_space<vmem>>, vector<16x1xf32>
    %41 = vector.broadcast %40 : vector<16x1xf32> to vector<16x128xf32>
    %42 = arith.mulf %39, %41 : vector<16x128xf32>
    %cst_18 = arith.constant dense<0.000000e+00> : vector<128xf32>
    %43 = vector.multi_reduction <add>, %42, %cst_18 [0] : vector<16x128xf32> to vector<128xf32>
    %44 = vector.shape_cast %43 : vector<128xf32> to vector<1x128xf32>
    %c3_19 = arith.constant 3 : index
    %c0_20 = arith.constant 0 : index
    %45 = vector.load %arg5[%c3_19, %c0_20] : memref<6x128xf32, #tpu.memory_space<vmem>>, vector<1x128xf32>
    %46 = arith.mulf %44, %45 : vector<1x128xf32>
    %47 = arith.addf %36, %46 : vector<1x128xf32>
    %c4_i32 = arith.constant 4 : i32
    %48 = tpu.dynamic_rotate %7 by %c4_i32 dim 1 : vector<16x128xf32>, i32 -> vector<16x128xf32>
    %49 = arith.subf %7, %48 : vector<16x128xf32>
    %50 = math.absf %49 : vector<16x128xf32>
    %c0_21 = arith.constant 0 : index
    %c4 = arith.constant 4 : index
    %51 = vector.load %arg4[%c0_21, %c4] : memref<16x6xf32, #tpu.memory_space<vmem>>, vector<16x1xf32>
    %52 = vector.broadcast %51 : vector<16x1xf32> to vector<16x128xf32>
    %53 = arith.mulf %50, %52 : vector<16x128xf32>
    %cst_22 = arith.constant dense<0.000000e+00> : vector<128xf32>
    %54 = vector.multi_reduction <add>, %53, %cst_22 [0] : vector<16x128xf32> to vector<128xf32>
    %55 = vector.shape_cast %54 : vector<128xf32> to vector<1x128xf32>
    %c4_23 = arith.constant 4 : index
    %c0_24 = arith.constant 0 : index
    %56 = vector.load %arg5[%c4_23, %c0_24] : memref<6x128xf32, #tpu.memory_space<vmem>>, vector<1x128xf32>
    %57 = arith.mulf %55, %56 : vector<1x128xf32>
    %58 = arith.addf %47, %57 : vector<1x128xf32>
    %c4_i32_25 = arith.constant 4 : i32
    %59 = tpu.dynamic_rotate %7 by %c4_i32_25 dim 0 : vector<16x128xf32>, i32 -> vector<16x128xf32>
    %60 = arith.subf %7, %59 : vector<16x128xf32>
    %61 = math.absf %60 : vector<16x128xf32>
    %c0_26 = arith.constant 0 : index
    %c5 = arith.constant 5 : index
    %62 = vector.load %arg4[%c0_26, %c5] : memref<16x6xf32, #tpu.memory_space<vmem>>, vector<16x1xf32>
    %63 = vector.broadcast %62 : vector<16x1xf32> to vector<16x128xf32>
    %64 = arith.mulf %61, %63 : vector<16x128xf32>
    %cst_27 = arith.constant dense<0.000000e+00> : vector<128xf32>
    %65 = vector.multi_reduction <add>, %64, %cst_27 [0] : vector<16x128xf32> to vector<128xf32>
    %66 = vector.shape_cast %65 : vector<128xf32> to vector<1x128xf32>
    %c5_28 = arith.constant 5 : index
    %c0_29 = arith.constant 0 : index
    %67 = vector.load %arg5[%c5_28, %c0_29] : memref<6x128xf32, #tpu.memory_space<vmem>>, vector<1x128xf32>
    %68 = arith.mulf %66, %67 : vector<1x128xf32>
    %69 = arith.addf %58, %68 : vector<1x128xf32>
    %c0_30 = arith.constant 0 : index
    %c0_31 = arith.constant 0 : index
    %c0_32 = arith.constant 0 : index
    %70 = vector.load %arg6[%c0_30, %c0_31, %c0_32] : memref<1x1x128xf32, #tpu.memory_space<vmem>>, vector<1x1x128xf32>
    %71 = vector.shape_cast %70 : vector<1x1x128xf32> to vector<1x128xf32>
    %72 = arith.addf %71, %69 : vector<1x128xf32>
    %c0_33 = arith.constant 0 : index
    %c0_34 = arith.constant 0 : index
    %c0_35 = arith.constant 0 : index
    %73 = vector.load %arg6[%c0_33, %c0_34, %c0_35] : memref<1x1x128xf32, #tpu.memory_space<vmem>>, vector<1x1x128xf32>
    %74 = vector.shape_cast %73 : vector<1x1x128xf32> to vector<1x128xf32>
    %75 = vector.shape_cast %72 : vector<1x128xf32> to vector<1x1x128xf32>
    tpu.vector_store %arg6[%c0_33, %c0_34, %c0_35], %75 {strides = array<i32>} : memref<1x1x128xf32, #tpu.memory_space<vmem>>, vector<1x1x128xf32>,
    return
  }
  func.func @transform_0(%arg0: i32, %arg1: i32) -> (i32, i32, i32) {
    %c0_i32 = arith.constant 0 : i32
    %c0_i32_0 = arith.constant 0 : i32
    return %arg0, %arg1, %c0_i32 : i32, i32, i32
  }
  func.func @transform_1(%arg0: i32, %arg1: i32) -> (i32, i32, i32) {
    %c0_i32 = arith.constant 0 : i32
    %c0_i32_0 = arith.constant 0 : i32
    return %arg0, %arg1, %c0_i32 : i32, i32, i32
  }
  func.func @transform_2(%arg0: i32, %arg1: i32) -> (i32, i32) {
    %c0_i32 = arith.constant 0 : i32
    %c0_i32_0 = arith.constant 0 : i32
    return %arg1, %c0_i32 : i32, i32
  }
  func.func @transform_3(%arg0: i32, %arg1: i32) -> (i32, i32) {
    %c0_i32 = arith.constant 0 : i32
    %c0_i32_0 = arith.constant 0 : i32
    %c0_i32_1 = arith.constant 0 : i32
    return %c0_i32, %c0_i32_0 : i32, i32
  }
  func.func @transform_4(%arg0: i32, %arg1: i32) -> (i32, i32, i32) {
    %c0_i32 = arith.constant 0 : i32
    %c0_i32_0 = arith.constant 0 : i32
    %c0_i32_1 = arith.constant 0 : i32
    return %arg0, %c0_i32, %c0_i32_0 : i32, i32, i32
  }
}

</mosaic_0001>

<llo_original>
// kernel: tpu_custom_call.1
$region0: #{tpu_custom_call.1}
  #allocation0 [shape = 'u32[]', space=smem, size = 0x4, offset = 0x4, fixed_abs, tag = 'smem constant byte address 0x4 - core index']
  #allocation1 [shape = 'u32[72,128]{1,0:T(1,128)}', space=vmem, size = 0x9000, scoped, tag = 'internal scratch']
  #allocation2 [shape = 'f32[4,128]{1,0:T(4,128)}', space=vmem, size = 0x800, scoped, tag = 'scratch operand']
  %s0 = inlined_call_operand.hbm [shape: f32[2,16,128], index: 0, kind: input, shape index: {}]
  %s1 = inlined_call_operand.hbm [shape: f32[2,16,128], index: 1, kind: input, shape index: {}]
  %s2 = inlined_call_operand.vmem [shape: f32[16,6], index: 2, kind: input, shape index: {}]
  %s3 = inlined_call_operand.vmem [shape: f32[6,128], index: 3, kind: input, shape index: {}]
  %s4 = inlined_call_operand.hbm [shape: f32[2,1,128], index: 4, kind: output, shape index: {}]
  %s5 = sld [smem:[#allocation0]]
  $region61: #{tpu_custom_call.1} parent=0
    _
  %s7 = ssub.s32 1, %s5
  %s8 = scalar_select 0, %s7, %s5
  $region1: #{tpu_custom_call.1} parent=0
    #allocation3 [shape = 'u8[16384]{0}', space=vmem, size = 0x4000, scoped, tag = 'input window, operand 0']
    #allocation4 [shape = 's32[2]{0}', space=sflag, size = 0x8, scoped, tag = 'scoped memory for tpu_custom_call.1']
    #allocation5 [shape = 's32[2]{0}', space=sflag, size = 0x8, scoped, tag = 'scoped memory for tpu_custom_call.1']
    #allocation6 [shape = 'u8[16384]{0}', space=vmem, size = 0x4000, scoped, tag = 'input window, operand 1']
    #allocation7 [shape = 's32[2]{0}', space=sflag, size = 0x8, scoped, tag = 'scoped memory for tpu_custom_call.1']
    #allocation8 [shape = 'u8[1024]{0}', space=vmem, size = 0x400, scoped, tag = 'output window, operand 0']
    %9 = vsyncpa [#allocation4], 0
    %s10 = scalar_lea.sflag [#allocation4], 1
    %11 = vsyncpa %s10, 0
    %12 = vsyncpa [#allocation7], 0
    %s13 = scalar_lea.sflag [#allocation7], 1
    %14 = vsyncpa %s13, 0
    %15 = vsyncpa [#allocation5], 0
    %s16 = scalar_lea.sflag [#allocation5], 1
    %17 = vsyncpa %s16, 0
    loop: start=0, step=1, limit=4
    $region2: #{tpu_custom_call.1} parent=1 // loop_pre_header
      _
    $region3: #{tpu_custom_call.1} parent=1 // loop_header
      %s19 = sphi 0, %s23
      %p20 = scmp.ge.s32.totalorder %s19, 4
      %s26 = sphi 0, %s38
      %s27 = sphi 0, %s34
      %s28 = sphi 0, %s26
      %s29 = sphi 0, %s27
      %s30 = sphi 0, %s28
      %s31 = sphi 0, %s29
      %s43 = sphi 0, %s45
      %s46 = sphi 0, %s43
      %s47 = sphi 0, %s46
      %s63 = sphi 0, %s47
      %s71 = sphi 0, %s73
      %s74 = sphi 0, %s71
      %s75 = sphi 0, %s74
      %s91 = sphi 0, %s75
      %s97 = sphi 0, %s99
      %s100 = sphi 0, %s97
      %s101 = sphi 0, %s100
      %s117 = sphi 0, %s101
      %s121 = sphi 0, %s121
      %s123 = sphi 0, %s121
      %s124 = sphi 0, %s123
      %s138 = sphi 0, %s124
      %s144 = sphi 0, %s146
      %s147 = sphi 0, %s144
      %s148 = sphi 0, %s147
      %s164 = sphi 0, %s148
    $region4: #{tpu_custom_call.1} parent=1 // loop_header_branch
      %22 = sbr.rel (%p20) target = $region8
    $region5: #{tpu_custom_call.1} parent=1 // loop_body
      %s24 = ssub.s32 %s19, 1
      %s25 = ssub.s32 %s19, 2
      %s32 = sadd.s32 1, %s27
      %p33 = scmp.ge.s32.totalorder %s32, 1
      %s34 = scalar_select %p33, 0, %s32
      %s35 = sadd.s32 1, %s26
      %s36 = scalar_select %p33, %s35, %s26
      %p37 = scmp.ge.s32.totalorder %s36, 2
      %s38 = scalar_select %p37, 0, %s36
      %s39 = ssub.s32 %s26, %s38
      %s40 = ssub.s32 %s27, %s34
      %s41 = sor.u32 %s39, %s40
      %p42 = scmp.eq.s32.totalorder %s41, 0
      %s44 = sadd.s32 %s43, 1
      %s45 = scalar_select %p42, %s43, %s44
      %p48 = pneg %p42
      %p49 = scmp.eq.s32.totalorder %s19, 1
      %p50 = por %p48, %p49
      %p51 = scmp.ne.s32.totalorder %s43, %s46
      %p52 = scmp.eq.s32.totalorder %s19, 0
      %p53 = por %p51, %p52
      %p54 = scmp.ne.s32.totalorder %s43, %s46
      %p55 = scmp.eq.s32.totalorder %s24, 1
      %p56 = por %p54, %p55
      %p57 = scmp.ne.s32.totalorder %s46, %s47
      %p58 = scmp.eq.s32.totalorder %s24, 0
      %p59 = por %p57, %p58
      %p60 = scmp.ne.s32.totalorder %s46, %s47
      %p61 = scmp.eq.s32.totalorder %s25, 1
      %p62 = por %p60, %p61
      %p64 = scmp.ne.s32.totalorder %s47, %s63
      %p65 = scmp.eq.s32.totalorder %s25, 0
      %p66 = por %p64, %p65
      %s67 = ssub.s32 %s26, %s38
      %s68 = ssub.s32 %s27, %s34
      %s69 = sor.u32 %s67, %s68
      %p70 = scmp.eq.s32.totalorder %s69, 0
      %s72 = sadd.s32 %s71, 1
      %s73 = scalar_select %p70, %s71, %s72
      %p76 = pneg %p70
      %p77 = scmp.eq.s32.totalorder %s19, 1
      %p78 = por %p76, %p77
      %p79 = scmp.ne.s32.totalorder %s71, %s74
      %p80 = scmp.eq.s32.totalorder %s19, 0
      %p81 = por %p79, %p80
      %p82 = scmp.ne.s32.totalorder %s71, %s74
      %p83 = scmp.eq.s32.totalorder %s24, 1
      %p84 = por %p82, %p83
      %p85 = scmp.ne.s32.totalorder %s74, %s75
      %p86 = scmp.eq.s32.totalorder %s24, 0
      %p87 = por %p85, %p86
      %p88 = scmp.ne.s32.totalorder %s74, %s75
      %p89 = scmp.eq.s32.totalorder %s25, 1
      %p90 = por %p88, %p89
      %p92 = scmp.ne.s32.totalorder %s75, %s91
      %p93 = scmp.eq.s32.totalorder %s25, 0
      %p94 = por %p92, %p93
      %s95 = ssub.s32 %s27, %s34
      %p96 = scmp.eq.s32.totalorder %s95, 0
      %s98 = sadd.s32 %s97, 1
      %s99 = scalar_select %p96, %s97, %s98
      %p102 = pneg %p96
      %p103 = scmp.eq.s32.totalorder %s19, 1
      %p104 = por %p102, %p103
      %p105 = scmp.ne.s32.totalorder %s97, %s100
      %p106 = scmp.eq.s32.totalorder %s19, 0
      %p107 = por %p105, %p106
      %p108 = scmp.ne.s32.totalorder %s97, %s100
      %p109 = scmp.eq.s32.totalorder %s24, 1
      %p110 = por %p108, %p109
      %p111 = scmp.ne.s32.totalorder %s100, %s101
      %p112 = scmp.eq.s32.totalorder %s24, 0
      %p113 = por %p111, %p112
      %p114 = scmp.ne.s32.totalorder %s100, %s101
      %p115 = scmp.eq.s32.totalorder %s25, 1
      %p116 = por %p114, %p115
      %p118 = scmp.ne.s32.totalorder %s101, %s117
      %p119 = scmp.eq.s32.totalorder %s25, 0
      %p120 = por %p118, %p119
      %s122 = sadd.s32 %s121, 1
      %p125 = scmp.eq.s32.totalorder %s19, 1
      %p126 = scmp.ne.s32.totalorder %s121, %s123
      %p127 = scmp.eq.s32.totalorder %s19, 0
      %p128 = por %p126, %p127
      %p129 = scmp.ne.s32.totalorder %s121, %s123
      %p130 = scmp.eq.s32.totalorder %s24, 1
      %p131 = por %p129, %p130
      %p132 = scmp.ne.s32.totalorder %s123, %s124
      %p133 = scmp.eq.s32.totalorder %s24, 0
      %p134 = por %p132, %p133
      %p135 = scmp.ne.s32.totalorder %s123, %s124
      %p136 = scmp.eq.s32.totalorder %s25, 1
      %p137 = por %p135, %p136
      %p139 = scmp.ne.s32.totalorder %s124, %s138
      %p140 = scmp.eq.s32.totalorder %s25, 0
      %p141 = por %p139, %p140
      %s142 = ssub.s32 %s26, %s38
      %p143 = scmp.eq.s32.totalorder %s142, 0
      %s145 = sadd.s32 %s144, 1
      %s146 = scalar_select %p143, %s144, %s145
      %p149 = pneg %p143
      %p150 = scmp.eq.s32.totalorder %s19, 1
      %p151 = por %p149, %p150
      %p152 = scmp.ne.s32.totalorder %s144, %s147
      %p153 = scmp.eq.s32.totalorder %s19, 0
      %p154 = por %p152, %p153
      %p155 = scmp.ne.s32.totalorder %s144, %s147
      %p156 = scmp.eq.s32.totalorder %s24, 1
      %p157 = por %p155, %p156
      %p158 = scmp.ne.s32.totalorder %s147, %s148
      %p159 = scmp.eq.s32.totalorder %s24, 0
      %p160 = por %p158, %p159
      %p161 = scmp.ne.s32.totalorder %s147, %s148
      %p162 = scmp.eq.s32.totalorder %s25, 1
      %p163 = por %p161, %p162
      %p165 = scmp.ne.s32.totalorder %s148, %s164
      %p166 = scmp.eq.s32.totalorder %s25, 0
      %p167 = por %p165, %p166
      %p168 = scmp.le.s32.totalorder 1, %s19
      %p169 = scmp.lt.s32.totalorder %s19, 3
      %p170 = pnand %p168, %p169
      %p171 = pneg %p170
      // Predicated region
      $region9: #{tpu_custom_call.1} parent=5 // pred_check
        _
      $region10: #{tpu_custom_call.1} parent=5 // pred_check_branch
        %173 = sbr.rel (%p170) target = $region12
      $region11: #{tpu_custom_call.1} parent=5 // pred_region
        %s174 = ssub.s32 %s19, 1
        // Predicated region
        $region13: #{tpu_custom_call.1} parent=11 // pred_check
          %p175 = pneg %p113
        $region14: #{tpu_custom_call.1} parent=11 // pred_check_branch
          %177 = sbr.rel (%p175) target = $region16
        $region15: #{tpu_custom_call.1} parent=11 // pred_region
          %s178 = smul.u32 2, %s29
          %p179 = scmp.lt.s32.totalorder %s178, 1
          %s180 = scalar_select %p179, %s178, 1
          %s181 = smul.addr %s180, 8
          %s182 = scalar_lea.vmem %s2, %s181
          %s183 = smul.u32 2, %s29
        $region16: #{tpu_custom_call.1} parent=11 // pred_fallthru
          _
        // Predicated region
        $region17: #{tpu_custom_call.1} parent=11 // pred_check
          %p184 = pneg %p134
        $region18: #{tpu_custom_call.1} parent=11 // pred_check_branch
          %186 = sbr.rel (%p184) target = $region20
        $region19: #{tpu_custom_call.1} parent=11 // pred_region
          _
        $region20: #{tpu_custom_call.1} parent=11 // pred_fallthru
          _
      $region12: #{tpu_custom_call.1} parent=5 // pred_fallthru
        _
      %p187 = scmp.lt.s32.totalorder %s19, 2
      // Predicated region
      $region21: #{tpu_custom_call.1} parent=5 // pred_check
        %p188 = pneg %p187
      $region22: #{tpu_custom_call.1} parent=5 // pred_check_branch
        %190 = sbr.rel (%p188) target = $region24
      $region23: #{tpu_custom_call.1} parent=5 // pred_region
        // Predicated region
        $region25: #{tpu_custom_call.1} parent=23 // pred_check
          %p191 = pneg %p53
        $region26: #{tpu_custom_call.1} parent=23 // pred_check_branch
          %193 = sbr.rel (%p191) target = $region28
        $region27: #{tpu_custom_call.1} parent=23 // pred_region
          %s194 = sand.u32 %s43, 1
          %s195 = scalar_lea.sflag [#allocation4], %s194
          %s196 = sand.u32 %s43, 1
          %s197 = smul.addr %s196, 16
          %s198 = scalar_lea.vmem [#allocation3], %s197
          %s199 = smul.u32 2, %s27
          %201 = vsyncadd %s195, 0
          %s202 = smul.addr %s26, 2
          %s203 = sadd.s32 %s199, %s202
          %s204 = smul.addr %s203, 8
          %s205 = scalar_lea.hbm %s0, %s204
          %s206 = sshll.u32 %s205, 4
          %s207 = int_to_ptr.hbm [resolvable:$true] %s206
          %s208 = sshll.u32 %s198, 4
          %s209 = int_to_ptr.vmem [resolvable:$true] %s208
          %214 = dma.hbm_to_vmem [thread:$0]  %s207, 256, %s209, %s195, 128, 128, 8
        $region28: #{tpu_custom_call.1} parent=23 // pred_fallthru
          _
        // Predicated region
        $region29: #{tpu_custom_call.1} parent=23 // pred_check
          %p215 = pneg %p81
        $region30: #{tpu_custom_call.1} parent=23 // pred_check_branch
          %217 = sbr.rel (%p215) target = $region32
        $region31: #{tpu_custom_call.1} parent=23 // pred_region
          %s218 = sand.u32 %s71, 1
          %s219 = scalar_lea.sflag [#allocation7], %s218
          %s220 = sand.u32 %s71, 1
          %s221 = smul.addr %s220, 16
          %s222 = scalar_lea.vmem [#allocation6], %s221
          %s223 = smul.u32 2, %s27
          %225 = vsyncadd %s219, 0
          %s226 = smul.addr %s26, 2
          %s227 = sadd.s32 %s223, %s226
          %s228 = smul.addr %s227, 8
          %s229 = scalar_lea.hbm %s1, %s228
          %s230 = sshll.u32 %s229, 4
          %s231 = int_to_ptr.hbm [resolvable:$true] %s230
          %s232 = sshll.u32 %s222, 4
          %s233 = int_to_ptr.vmem [resolvable:$true] %s232
          %238 = dma.hbm_to_vmem [thread:$0]  %s231, 256, %s233, %s219, 128, 128, 8
        $region32: #{tpu_custom_call.1} parent=23 // pred_fallthru
          _
      $region24: #{tpu_custom_call.1} parent=5 // pred_fallthru
        _
      %p239 = scmp.le.s32.totalorder 1, %s19
      %p240 = scmp.lt.s32.totalorder %s19, 3
      %p241 = pnand %p239, %p240
      %p242 = pneg %p241
      // Predicated region
      $region33: #{tpu_custom_call.1} parent=5 // pred_check
        _
      $region34: #{tpu_custom_call.1} parent=5 // pred_check_branch
        %244 = sbr.rel (%p241) target = $region36
      $region35: #{tpu_custom_call.1} parent=5 // pred_region
        %s245 = ssub.s32 %s19, 1
        %s246 = sand.u32 %s46, 1
        %s247 = scalar_lea.sflag [#allocation4], %s246
        %s248 = sand.u32 %s46, 1
        %s249 = smul.addr %s248, 16
        %s250 = scalar_lea.vmem [#allocation3], %s249
        // Predicated region
        $region37: #{tpu_custom_call.1} parent=35 // pred_check
          %p251 = pneg %p59
        $region38: #{tpu_custom_call.1} parent=35 // pred_check_branch
          %253 = sbr.rel (%p251) target = $region40
        $region39: #{tpu_custom_call.1} parent=35 // pred_region
          %255 = dma.done %s247, 256
        $region40: #{tpu_custom_call.1} parent=35 // pred_fallthru
          _
        %s256 = sand.u32 %s74, 1
        %s257 = scalar_lea.sflag [#allocation7], %s256
        %s258 = sand.u32 %s74, 1
        %s259 = smul.addr %s258, 16
        %s260 = scalar_lea.vmem [#allocation6], %s259
        // Predicated region
        $region41: #{tpu_custom_call.1} parent=35 // pred_check
          %p261 = pneg %p87
        $region42: #{tpu_custom_call.1} parent=35 // pred_check_branch
          %263 = sbr.rel (%p261) target = $region44
        $region43: #{tpu_custom_call.1} parent=35 // pred_region
          %265 = dma.done %s257, 256
        $region44: #{tpu_custom_call.1} parent=35 // pred_fallthru
          _
        %s266 = sand.u32 %s46, 1
        %s267 = scalar_lea.sflag [#allocation4], %s266
        %s268 = sand.u32 %s46, 1
        %s269 = smul.addr %s268, 16
        %s270 = scalar_lea.vmem [#allocation3], %s269
        %p271 = pneg %p59
        %p272 = pneg %p56
        %s273 = sand.u32 %s74, 1
        %s274 = scalar_lea.sflag [#allocation7], %s273
        %s275 = sand.u32 %s74, 1
        %s276 = smul.addr %s275, 16
        %s277 = scalar_lea.vmem [#allocation6], %s276
        %p278 = pneg %p87
        %p279 = pneg %p84
        %s280 = smul.u32 2, %s29
        %p281 = scmp.lt.s32.totalorder %s280, 1
        %s282 = scalar_select %p281, %s280, 1
        %s283 = smul.addr %s282, 8
        %s284 = scalar_lea.vmem %s2, %s283
        %p285 = pneg %p113
        %p286 = pneg %p110
        %p287 = pneg %p134
        %p288 = pneg %p131
        %p289 = pneg %p160
        %p290 = pneg %p157
        %s291 = sand.u32 %s147, 1
        %s292 = scalar_lea.sflag [#allocation5], %s291
        %s293 = sand.u32 %s147, 1
        %s294 = scalar_lea.vmem [#allocation8], %s293
        %s295 = smul.u32 2, %s29
        %s296 = smul.u32 2, %s29
        %s297 = smul.u32 2, %s29
        %p298 = scmp.lt.s32.totalorder %s297, 1
        %s299 = scalar_select %p298, %s297, 1
        %s300 = smul.addr %s299, 8
        %s301 = scalar_lea.vmem %s2, %s300
        %s302 = smul.u32 2, %s29
        %p303 = scmp.eq.s32.totalorder %s29, 0
        // Predicated region
        $region45: #{tpu_custom_call.1} parent=35 // pred_check
          %p304 = pneg %p303
        $region46: #{tpu_custom_call.1} parent=35 // pred_check_branch
          %306 = sbr.rel (%p304) target = $region48
        $region47: #{tpu_custom_call.1} parent=35 // pred_region
          %307 = vst [vmem:[%s294] sm:$0x1] 0.0
        $region48: #{tpu_custom_call.1} parent=35 // pred_fallthru
          _
        %v308 = vld [vmem:[%s250] sm:$0xff]
        %v309 = vld [vmem:[%s250 + $0x8] sm:$0xff]
        %v310 = vld [vmem:[%s260] sm:$0xff]
        %v311 = vld [vmem:[%s260 + $0x8] sm:$0xff]
        %v312 = vsub.f32 %v308, %v310
        %v313 = vsub.f32 %v309, %v311
        %314 = vrot.lane.b32.xlu0 %v312, 1
        %v315 = vpop.permute.xlu0 %314
        %316 = vrot.lane.b32.xlu0 %v313, 1
        %v317 = vpop.permute.xlu0 %316
        %v318 = vsub.f32 %v312, %v315
        %v319 = vsub.f32 %v313, %v317
        %v320 = vand.u32 2147483647, %v318
        %v321 = vand.u32 2147483647, %v319
        %v322 = vadd.f32 %v320, %v321
        %v323 = vrot.slane %v322, 4
        %v324 = vadd.f32 %v322, %v323
        %v325 = vrot.slane %v324, 2
        %v326 = vadd.f32 %v324, %v325
        %v327 = vrot.slane %v326, 1
        %v328 = vadd.f32 %v326, %v327
        %v329 = vld [vmem:[%s3] sm:$0x1]
        %v330 = vmul.f32 %v328, %v329
        %v331 = vadd.f32 %v330, 0.0
        %v332 = vrot.slane %v312, 7
        %v333 = vrot.slane %v313, 7
        %v334 = vlaneseq
        %v335 = vshrl.u32 %v334, 7
        %vm336 = vcmp.lt.s32.totalorder %v335, 1
        %v337 = vsel %vm336, %v332, %v333
        %v338 = vsel %vm336, %v333, %v332
        %v339 = vsub.f32 %v312, %v338
        %v340 = vsub.f32 %v313, %v337
        %v341 = vand.u32 2147483647, %v339
        %v342 = vand.u32 2147483647, %v340
        %v343 = vld [vmem:[%s301] sm:$0xff]
        %v344 = vld [vmem:[%s301 + $0x8] sm:$0xff]
        %346 = vset.pattern.permute.xlu0 1
        %347 = vperm.xlu0 %346, %v343
        %v348 = vpop.permute.xlu0 %347
        %351 = vset.pattern.permute.xlu0 1
        %352 = vperm.xlu0 %351, %v344
        %v353 = vpop.permute.xlu0 %352
        %v355 = vmul.f32 %v341, %v348
        %v356 = vmul.f32 %v342, %v353
        %v357 = vadd.f32 %v355, %v356
        %v358 = vrot.slane %v357, 4
        %v359 = vadd.f32 %v357, %v358
        %v360 = vrot.slane %v359, 2
        %v361 = vadd.f32 %v359, %v360
        %v362 = vrot.slane %v361, 1
        %v363 = vadd.f32 %v361, %v362
        %v364 = vadd.f32 %v331, %v363
        %365 = vrot.lane.b32.xlu0 %v312, 2
        %v366 = vpop.permute.xlu0 %365
        %367 = vrot.lane.b32.xlu0 %v313, 2
        %v368 = vpop.permute.xlu0 %367
        %v369 = vsub.f32 %v312, %v366
        %v370 = vsub.f32 %v313, %v368
        %v371 = vand.u32 2147483647, %v369
        %v372 = vand.u32 2147483647, %v370
        %373 = vset.pattern.permute.xlu0 2
        %374 = vperm.xlu0 %373, %v343
        %v375 = vpop.permute.xlu0 %374
        %377 = vset.pattern.permute.xlu0 2
        %378 = vperm.xlu0 %377, %v344
        %v379 = vpop.permute.xlu0 %378
        %v381 = vmul.f32 %v371, %v375
        %v382 = vmul.f32 %v372, %v379
        %v383 = vadd.f32 %v381, %v382
        %v384 = vrot.slane %v383, 4
        %v385 = vadd.f32 %v383, %v384
        %v386 = vrot.slane %v385, 2
        %v387 = vadd.f32 %v385, %v386
        %v388 = vrot.slane %v387, 1
        %v389 = vadd.f32 %v387, %v388
        %v390 = vld [vmem:[%s3 + $0x2] sm:$0x1]
        %v391 = vmul.f32 %v389, %v390
        %v392 = vadd.f32 %v364, %v391
        %v393 = vrot.slane %v312, 6
        %v394 = vrot.slane %v313, 6
        %vm395 = vcmp.lt.s32.totalorder %v335, 2
        %v396 = vsel %vm395, %v393, %v394
        %v397 = vsel %vm395, %v394, %v393
        %v398 = vsub.f32 %v312, %v397
        %v399 = vsub.f32 %v313, %v396
        %v400 = vand.u32 2147483647, %v398
        %v401 = vand.u32 2147483647, %v399
        %402 = vset.pattern.permute.xlu0 3
        %403 = vperm.xlu0 %402, %v343
        %v404 = vpop.permute.xlu0 %403
        %406 = vset.pattern.permute.xlu0 3
        %407 = vperm.xlu0 %406, %v344
        %v408 = vpop.permute.xlu0 %407
        %v410 = vmul.f32 %v400, %v404
        %v411 = vmul.f32 %v401, %v408
        %v412 = vadd.f32 %v410, %v411
        %v413 = vrot.slane %v412, 4
        %v414 = vadd.f32 %v412, %v413
        %v415 = vrot.slane %v414, 2
        %v416 = vadd.f32 %v414, %v415
        %v417 = vrot.slane %v416, 1
        %v418 = vadd.f32 %v416, %v417
        %v419 = vld [vmem:[%s3 + $0x3] sm:$0x1]
        %v420 = vmul.f32 %v418, %v419
        %v421 = vadd.f32 %v392, %v420
        %422 = vrot.lane.b32.xlu0 %v312, 4
        %v423 = vpop.permute.xlu0 %422
        %424 = vrot.lane.b32.xlu0 %v313, 4
        %v425 = vpop.permute.xlu0 %424
        %v426 = vsub.f32 %v312, %v423
        %v427 = vsub.f32 %v313, %v425
        %v428 = vand.u32 2147483647, %v426
        %v429 = vand.u32 2147483647, %v427
        %430 = vset.pattern.permute.xlu0 4
        %431 = vperm.xlu0 %430, %v343
        %v432 = vpop.permute.xlu0 %431
        %434 = vset.pattern.permute.xlu0 4
        %435 = vperm.xlu0 %434, %v344
        %v436 = vpop.permute.xlu0 %435
        %v438 = vmul.f32 %v428, %v432
        %v439 = vmul.f32 %v429, %v436
        %v440 = vadd.f32 %v438, %v439
        %v441 = vrot.slane %v440, 4
        %v442 = vadd.f32 %v440, %v441
        %v443 = vrot.slane %v442, 2
        %v444 = vadd.f32 %v442, %v443
        %v445 = vrot.slane %v444, 1
        %v446 = vadd.f32 %v444, %v445
        %v447 = vld [vmem:[%s3 + $0x4] sm:$0x1]
        %v448 = vmul.f32 %v446, %v447
        %v449 = vadd.f32 %v421, %v448
        %v450 = vrot.slane %v312, 4
        %v451 = vrot.slane %v313, 4
        %vm452 = vcmp.lt.s32.totalorder %v335, 4
        %v453 = vsel %vm452, %v450, %v451
        %v454 = vsel %vm452, %v451, %v450
        %v455 = vsub.f32 %v312, %v454
        %v456 = vsub.f32 %v313, %v453
        %v457 = vand.u32 2147483647, %v455
        %v458 = vand.u32 2147483647, %v456
        %459 = vset.pattern.permute.xlu0 5
        %460 = vperm.xlu0 %459, %v343
        %v461 = vpop.permute.xlu0 %460
        %463 = vset.pattern.permute.xlu0 5
        %464 = vperm.xlu0 %463, %v344
        %v465 = vpop.permute.xlu0 %464
        %v467 = vmul.f32 %v457, %v461
        %v468 = vmul.f32 %v458, %v465
        %v469 = vadd.f32 %v467, %v468
        %v470 = vrot.slane %v469, 4
        %v471 = vadd.f32 %v469, %v470
        %v472 = vrot.slane %v471, 2
        %v473 = vadd.f32 %v471, %v472
        %v474 = vrot.slane %v473, 1
        %v475 = vadd.f32 %v473, %v474
        %v476 = vld [vmem:[%s3 + $0x5] sm:$0x1]
        %v477 = vmul.f32 %v475, %v476
        %v478 = vadd.f32 %v449, %v477
        %v479 = vld [vmem:[%s294] sm:$0x1]
        %v480 = vadd.f32 %v479, %v478
        %481 = vst [vmem:[%s294] sm:$0x1] %v480
        %s482 = sand.u32 %s147, 1
        %s483 = scalar_lea.sflag [#allocation5], %s482
        %s484 = sand.u32 %s147, 1
        %s485 = scalar_lea.vmem [#allocation8], %s484
        // Predicated region
        $region49: #{tpu_custom_call.1} parent=35 // pred_check
          %p486 = pneg %p157
        $region50: #{tpu_custom_call.1} parent=35 // pred_check_branch
          %488 = sbr.rel (%p486) target = $region52
        $region51: #{tpu_custom_call.1} parent=35 // pred_region
          %490 = vsyncadd %s483, 0
          %s491 = scalar_lea.hbm %s4, %s28
          %s493 = sshll.u32 %s485, 4
          %s494 = int_to_ptr.vmem [resolvable:$true] %s493
          %s495 = sshll.u32 %s491, 4
          %s496 = int_to_ptr.hbm [resolvable:$true] %s495
          %498 = dma.vmem_to_hbm [thread:$0]  %s494, 16, %s496, %s483
        $region52: #{tpu_custom_call.1} parent=35 // pred_fallthru
          _
      $region36: #{tpu_custom_call.1} parent=5 // pred_fallthru
        _
      %p499 = scmp.le.s32.totalorder 2, %s19
      // Predicated region
      $region53: #{tpu_custom_call.1} parent=5 // pred_check
        %p500 = pneg %p499
      $region54: #{tpu_custom_call.1} parent=5 // pred_check_branch
        %502 = sbr.rel (%p500) target = $region56
      $region55: #{tpu_custom_call.1} parent=5 // pred_region
        %s503 = ssub.s32 %s19, 2
        // Predicated region
        $region57: #{tpu_custom_call.1} parent=55 // pred_check
          %p504 = pneg %p163
        $region58: #{tpu_custom_call.1} parent=55 // pred_check_branch
          %506 = sbr.rel (%p504) target = $region60
        $region59: #{tpu_custom_call.1} parent=55 // pred_region
          %s507 = sand.u32 %s148, 1
          %s508 = scalar_lea.sflag [#allocation5], %s507
          %s509 = sand.u32 %s148, 1
          %s510 = scalar_lea.vmem [#allocation8], %s509
          %512 = dma.done %s508, 16
        $region60: #{tpu_custom_call.1} parent=55 // pred_fallthru
          _
      $region56: #{tpu_custom_call.1} parent=5 // pred_fallthru
        _
    $region6: #{tpu_custom_call.1} parent=1 // loop_footer
      %s23 = sadd.s32 1, %s19
    $region7: #{tpu_custom_call.1} parent=1 // loop_footer_branch
      %18 = sbr.rel target = $region3
    $region8: #{tpu_custom_call.1} parent=1 // loop_exit
      _
    %513 = vsyncpa [#allocation4], 1
    %s514 = scalar_lea.sflag [#allocation4], 1
    %515 = vsyncpa %s514, 1
    %516 = vsyncpa [#allocation7], 1
    %s517 = scalar_lea.sflag [#allocation7], 1
    %518 = vsyncpa %s517, 1
    %519 = vsyncpa [#allocation5], 1
    %s520 = scalar_lea.sflag [#allocation5], 1
    %521 = vsyncpa %s520, 1

</llo_original>
